<compile_context>
chip_gen: v7x
topology: tpu7x:2x2x1
jax: 0.10.0
libtpu: 0.0.40
codegen_flags: <defaults>
</compile_context>

<pallas_src>
import jax
import jax.numpy as jnp
from jax.experimental import pallas as pl
from jax.experimental.pallas import tpu as pltpu

# ---------------------------------------------------------------- config
N, CIN, H, W = 2, 3, 16, 16        # small NCHW input, 3-channel image
CH = 32                            # hidden channels per branch stem
CH3 = 3 * CH                       # fused stem width (3 branches) = 96
CH3_PAD = 128                      # lane-padded fused stem width
K = 9 * CIN                        # im2col patch size (3x3 conv) = 27
KPAD = 32                          # contraction dim padded; col K carries 1.0
HW = H * W                         # spatial positions per sample = 256
NUM_CLASSES = 2
OUT_PAD = 128                      # lane-dense padded output width


# ---------------------------------------------------------------- kernel
def ensemble_kernel(patches_ref, wc_ref, wh_ref, bh_ref, out_ref):
    # Fused stem: ONE bf16 MXU matmul covering all three branches, f32 accum.
    # Bias is folded into wc (patch column K is constant 1.0), so the only
    # VPU epilogue op on the (N*HW, 128) tensor is the ReLU, kept in f32
    # (v5e has no bf16 VPU).
    feat = jnp.dot(patches_ref[...], wc_ref[...],
                   preferred_element_type=jnp.float32)         # (N*HW, 128) f32
    feat = jnp.maximum(feat, 0.0)

    # Batched GAP: split the row axis per sample (HW=256 is sublane-aligned)
    # and reduce over HW in one pass.  The 1/HW (and the 1/3 ensemble average)
    # are folded into wh in the wrapper.
    gap = jnp.sum(feat.reshape(N, HW, CH3_PAD), axis=1)        # (N, 128) f32

    # ONE combined head matmul (bf16 operands, f32 accum) + f32 bias,
    # ONE full-block 128-lane store.
    out_ref[...] = (jnp.dot(gap.astype(jnp.bfloat16), wh_ref[...],
                            preferred_element_type=jnp.float32)
                    + bh_ref[...])


def _full_spec(shape):
    # whole-array block (no tiling needed at these small sizes)
    return pl.BlockSpec(shape, lambda: (0,) * len(shape))


# ---------------------------------------------------------------- glue
def im2col_3x3(x_nhwc):
    """3x3, stride 1, pad 1 patches.  (N,H,W,C) -> (N*H*W, 9*C)."""
    n, h, w, c = x_nhwc.shape
    xp = jnp.pad(x_nhwc, ((0, 0), (1, 1), (1, 1), (0, 0)))
    cols = []
    for di in range(3):
        for dj in range(3):
            cols.append(xp[:, di:di + h, dj:dj + w, :])
    patches = jnp.stack(cols, axis=3)           # (N, H, W, 9, C)
    return patches.reshape(n * h * w, 9 * c)


def make_params(key):
    """Deterministic synthetic weights for the three branches."""
    params = []
    for _ in range(3):
        k1, k2, k3, k4, key = jax.random.split(key, 5)
        wc = jax.random.normal(k1, (K, CH), jnp.float32) * 0.1
        bc = jax.random.normal(k2, (1, CH), jnp.float32) * 0.01
        wh = jax.random.normal(k3, (CH, NUM_CLASSES), jnp.float32) * 0.1
        bh = jax.random.normal(k4, (1, NUM_CLASSES), jnp.float32) * 0.01
        params += [wc, bc, wh, bh]
    return params


def pack_params(params):
    """Fuse per-branch weights into the packed arrays the kernel consumes."""
    wcs = [params[4 * i + 0] for i in range(3)]
    bcs = [params[4 * i + 1] for i in range(3)]
    whs = [params[4 * i + 2] for i in range(3)]
    bhs = [params[4 * i + 3] for i in range(3)]

    # Fused stem weight (K, 96) -> (KPAD, 128), bf16 MXU operand.
    # Row K holds the fused bias (pairs with the constant-1.0 patch column);
    # rows K+1.. and columns 96.. are zero, so the padding is exact.
    wc_f = jnp.concatenate(wcs, axis=1)                        # (K, 96)
    bc_f = jnp.concatenate(bcs, axis=1)                        # (1, 96)
    wc_full = jnp.zeros((KPAD, CH3_PAD), jnp.float32)
    wc_full = wc_full.at[:K, :CH3].set(wc_f)
    wc_full = wc_full.at[K, :CH3].set(bc_f[0])                 # bias row
    wc_full = wc_full.astype(jnp.bfloat16)

    # Combined head with the 1/3 ensemble average AND the 1/HW GAP scale
    # folded in; rows padded to 128, columns lane-padded to 128; bf16 operand.
    wh_c = jnp.concatenate(whs, axis=0) * (1.0 / (3.0 * HW))   # (96, 2)
    wh_full = jnp.zeros((CH3_PAD, OUT_PAD), jnp.float32)
    wh_full = wh_full.at[:CH3, :NUM_CLASSES].set(wh_c)
    wh_full = wh_full.astype(jnp.bfloat16)

    bh_c = (bhs[0] + bhs[1] + bhs[2]) * (1.0 / 3.0)            # (1, 2)
    bh_full = jnp.zeros((1, OUT_PAD), jnp.float32)
    bh_full = bh_full.at[:, :NUM_CLASSES].set(bh_c)            # f32 bias
    return wc_full, wh_full, bh_full


def ensemble_forward(x_nchw, params):
    # NCHW -> NHWC, then im2col (conv lowering glue)
    x_nhwc = jnp.transpose(x_nchw, (0, 2, 3, 1)).astype(jnp.float32)
    patches = im2col_3x3(x_nhwc)                               # (N*HW, K) f32
    rows = patches.shape[0]
    ones = jnp.ones((rows, 1), jnp.float32)                    # bias column
    zeros = jnp.zeros((rows, KPAD - K - 1), jnp.float32)
    patches = jnp.concatenate([patches, ones, zeros],
                              axis=1).astype(jnp.bfloat16)     # (N*HW, KPAD)

    wc_full, wh_full, bh_full = pack_params(params)
    in_arrays = [patches, wc_full, wh_full, bh_full]

    out = pl.pallas_call(
        ensemble_kernel,
        out_shape=jax.ShapeDtypeStruct((N, OUT_PAD), jnp.float32),
        in_specs=[_full_spec(a.shape) for a in in_arrays],
        out_specs=_full_spec((N, OUT_PAD)),
    )(*in_arrays)
    return out[:, :NUM_CLASSES]


# ---------------------------------------------------------------- main
if __name__ == "__main__":
    key = jax.random.PRNGKey(0)
    kx, kp = jax.random.split(key)
    x = jax.random.normal(kx, (N, CIN, H, W), jnp.float32)     # NCHW, like PyTorch
    params = make_params(kp)

    logits = jax.block_until_ready(ensemble_forward(x, params))

    # reference check in plain JAX (same math as the module: per-branch
    # conv-stem + bias + ReLU, GAP mean, head, ensemble average; bf16 stem
    # operands to mirror the kernel's MXU precision)
    x_nhwc = jnp.transpose(x, (0, 2, 3, 1))
    patches = im2col_3x3(x_nhwc)
    patches_bf = patches.astype(jnp.bfloat16)
    refs = []
    for i in range(3):
        wc, bc, wh, bh = params[4 * i: 4 * i + 4]
        feat = jnp.dot(patches_bf, wc.astype(jnp.bfloat16),
                       preferred_element_type=jnp.float32) + bc
        feat = jnp.maximum(feat, 0.0).reshape(N, HW, CH)
        refs.append(feat.mean(axis=1) @ wh + bh)
    ref = (refs[0] + refs[1] + refs[2]) / 3.0

    assert logits.shape == (N, NUM_CLASSES)
    # tolerance loosened vs. pure-f32: bf16 MXU operands (stem + head) and the
    # bf16-folded bias introduce ~1e-3 noise, well under 1e-2.
    assert jnp.allclose(logits, ref, atol=1e-2, rtol=1e-2), (logits, ref)

    print("KERNEL_OK")
</pallas_src>

<mosaic_0001>
module attributes {stable_mosaic.version = 11 : i64} {
  func.func @ensemble_kernel(%arg0: memref<512x32xbf16, #tpu.memory_space<vmem>>, %arg1: memref<32x128xbf16, #tpu.memory_space<vmem>>, %arg2: memref<128x128xbf16, #tpu.memory_space<vmem>>, %arg3: memref<1x128xf32, #tpu.memory_space<vmem>>, %arg4: memref<2x128xf32, #tpu.memory_space<vmem>>) attributes {dimension_semantics = [], scalar_prefetch = 0 : i64, scratch_operands = 0 : i64, tpu.core_type = #tpu.core_type<tc>} {
    %c0 = arith.constant 0 : index
    %c0_0 = arith.constant 0 : index
    %0 = vector.load %arg0[%c0, %c0_0] : memref<512x32xbf16, #tpu.memory_space<vmem>>, vector<512x32xbf16>
    %c0_1 = arith.constant 0 : index
    %c0_2 = arith.constant 0 : index
    %1 = vector.load %arg1[%c0_1, %c0_2] : memref<32x128xbf16, #tpu.memory_space<vmem>>, vector<32x128xbf16>
    %cst = arith.constant dense<0.000000e+00> : vector<512x128xf32>
    %2 = tpu.matmul %0, %1, %cst {dimension_numbers = #tpu.dot_dimension_numbers<[1], [0], [0], [1], [0, 0, 1, 1], [], []>} : vector<512x32xbf16>, vector<32x128xbf16>, vector<512x128xf32> -> vector<512x128xf32>
    %cst_3 = arith.constant 0.000000e+00 : f32
    %3 = vector.broadcast %cst_3 : f32 to vector<512x128xf32>
    %4 = arith.maximumf %2, %3 : vector<512x128xf32>
    %5 = vector.shape_cast %4 : vector<512x128xf32> to vector<2x256x128xf32>
    %cst_4 = arith.constant dense<0.000000e+00> : vector<2x128xf32>
    %6 = vector.multi_reduction <add>, %5, %cst_4 [1] : vector<2x256x128xf32> to vector<2x128xf32>
    %7 = arith.truncf %6 : vector<2x128xf32> to vector<2x128xbf16>
    %c0_5 = arith.constant 0 : index
    %c0_6 = arith.constant 0 : index
    %8 = vector.load %arg2[%c0_5, %c0_6] : memref<128x128xbf16, #tpu.memory_space<vmem>>, vector<128x128xbf16>
    %cst_7 = arith.constant dense<0.000000e+00> : vector<2x128xf32>
    %9 = tpu.matmul %7, %8, %cst_7 {dimension_numbers = #tpu.dot_dimension_numbers<[1], [0], [0], [1], [0, 0, 1, 1], [], []>} : vector<2x128xbf16>, vector<128x128xbf16>, vector<2x128xf32> -> vector<2x128xf32>
    %c0_8 = arith.constant 0 : index
    %c0_9 = arith.constant 0 : index
    %10 = vector.load %arg3[%c0_8, %c0_9] : memref<1x128xf32, #tpu.memory_space<vmem>>, vector<1x128xf32>
    %11 = vector.broadcast %10 : vector<1x128xf32> to vector<2x128xf32>
    %12 = arith.addf %9, %11 : vector<2x128xf32>
    %c0_10 = arith.constant 0 : index
    %c0_11 = arith.constant 0 : index
    %13 = vector.load %arg4[%c0_10, %c0_11] : memref<2x128xf32, #tpu.memory_space<vmem>>, vector<2x128xf32>
    tpu.vector_store %arg4[%c0_10, %c0_11], %12 {strides = array<i32>} : memref<2x128xf32, #tpu.memory_space<vmem>>, vector<2x128xf32>,
    return
  }
}

</mosaic_0001>

<llo_original>
// kernel: tpu_custom_call.1
$region0: #{tpu_custom_call.1}
  #allocation0 [shape = 'u32[]', space=smem, size = 0x4, offset = 0x4, fixed_abs, tag = 'smem constant byte address 0x4 - core index']
  #allocation1 [shape = 'u32[144,128]{1,0:T(1,128)}', space=vmem, size = 0x12000, scoped, tag = 'internal scratch']
  %s0 = inlined_call_operand.vmem [shape: bf16[512,32], index: 0, kind: input, shape index: {}]
  %s1 = inlined_call_operand.vmem [shape: bf16[32,128], index: 1, kind: input, shape index: {}]
  %s2 = inlined_call_operand.vmem [shape: bf16[128,128], index: 2, kind: input, shape index: {}]
  %s3 = inlined_call_operand.vmem [shape: f32[1,128], index: 3, kind: input, shape index: {}]
  %s4 = inlined_call_operand.hbm [shape: f32[2,128], index: 4, kind: output, shape index: {}]
  %s5 = sld [smem:[#allocation0]]
  $region26: #{tpu_custom_call.1} parent=0
    _
  %s7 = ssub.s32 1, %s5
  %s8 = scalar_select 0, %s7, %s5
  $region1: #{tpu_custom_call.1} parent=0
    #allocation2 [shape = 'u8[1024]{0}', space=vmem, size = 0x400, scoped, tag = 'output window, operand 0, single buffered']
    #allocation3 [shape = 's32[1]{0}', space=sflag, size = 0x4, scoped, tag = 'scoped memory for tpu_custom_call.1']
    %9 = vsyncpa [#allocation3], 0
    // Predicated region
    $region2: #{tpu_custom_call.1} parent=1 // pred_check
      _
    $region3: #{tpu_custom_call.1} parent=1 // pred_check_branch
      %11 = sbr.rel (0) target = $region5
    $region4: #{tpu_custom_call.1} parent=1 // pred_region
      _
    $region5: #{tpu_custom_call.1} parent=1 // pred_fallthru
      _
    // Predicated region
    $region6: #{tpu_custom_call.1} parent=1 // pred_check
      _
    $region7: #{tpu_custom_call.1} parent=1 // pred_check_branch
      %13 = sbr.rel (0) target = $region9
    $region8: #{tpu_custom_call.1} parent=1 // pred_region
      _
    $region9: #{tpu_custom_call.1} parent=1 // pred_fallthru
      _
    // Predicated region
    $region10: #{tpu_custom_call.1} parent=1 // pred_check
      _
    $region11: #{tpu_custom_call.1} parent=1 // pred_check_branch
      %15 = sbr.rel (0) target = $region13
    $region12: #{tpu_custom_call.1} parent=1 // pred_region
      _
    $region13: #{tpu_custom_call.1} parent=1 // pred_fallthru
      _
    // Predicated region
    $region14: #{tpu_custom_call.1} parent=1 // pred_check
      _
    $region15: #{tpu_custom_call.1} parent=1 // pred_check_branch
      %17 = sbr.rel (0) target = $region17
    $region16: #{tpu_custom_call.1} parent=1 // pred_region
      _
    $region17: #{tpu_custom_call.1} parent=1 // pred_fallthru
      _
    %v19 = vld [vmem:[%s0] sm:$0xf]
    %v20 = vld [vmem:[%s0 + $0x4] sm:$0xf]
    %v21 = vld [vmem:[%s0 + $0x8] sm:$0xf]
    %v22 = vld [vmem:[%s0 + $0xc] sm:$0xf]
    %v23 = vld [vmem:[%s0 + $0x10] sm:$0xf]
    %v24 = vld [vmem:[%s0 + $0x14] sm:$0xf]
    %v25 = vld [vmem:[%s0 + $0x18] sm:$0xf]
    %v26 = vld [vmem:[%s0 + $0x1c] sm:$0xf]
    %v27 = vld [vmem:[%s0 + $0x20] sm:$0xf]
    %v28 = vld [vmem:[%s0 + $0x24] sm:$0xf]
    %v29 = vld [vmem:[%s0 + $0x28] sm:$0xf]
    %v30 = vld [vmem:[%s0 + $0x2c] sm:$0xf]
    %v31 = vld [vmem:[%s0 + $0x30] sm:$0xf]
    %v32 = vld [vmem:[%s0 + $0x34] sm:$0xf]
    %v33 = vld [vmem:[%s0 + $0x38] sm:$0xf]
    %v34 = vld [vmem:[%s0 + $0x3c] sm:$0xf]
    %v35 = vld [vmem:[%s0 + $0x40] sm:$0xf]
    %v36 = vld [vmem:[%s0 + $0x44] sm:$0xf]
    %v37 = vld [vmem:[%s0 + $0x48] sm:$0xf]
    %v38 = vld [vmem:[%s0 + $0x4c] sm:$0xf]
    %v39 = vld [vmem:[%s0 + $0x50] sm:$0xf]
    %v40 = vld [vmem:[%s0 + $0x54] sm:$0xf]
    %v41 = vld [vmem:[%s0 + $0x58] sm:$0xf]
    %v42 = vld [vmem:[%s0 + $0x5c] sm:$0xf]
    %v43 = vld [vmem:[%s0 + $0x60] sm:$0xf]
    %v44 = vld [vmem:[%s0 + $0x64] sm:$0xf]
    %v45 = vld [vmem:[%s0 + $0x68] sm:$0xf]
    %v46 = vld [vmem:[%s0 + $0x6c] sm:$0xf]
    %v47 = vld [vmem:[%s0 + $0x70] sm:$0xf]
    %v48 = vld [vmem:[%s0 + $0x74] sm:$0xf]
    %v49 = vld [vmem:[%s0 + $0x78] sm:$0xf]
    %v50 = vld [vmem:[%s0 + $0x7c] sm:$0xf]
    %v51 = vld [vmem:[%s0 + $0x80] sm:$0xf]
    %v52 = vld [vmem:[%s0 + $0x84] sm:$0xf]
    %v53 = vld [vmem:[%s0 + $0x88] sm:$0xf]
    %v54 = vld [vmem:[%s0 + $0x8c] sm:$0xf]
    %v55 = vld [vmem:[%s0 + $0x90] sm:$0xf]
    %v56 = vld [vmem:[%s0 + $0x94] sm:$0xf]
    %v57 = vld [vmem:[%s0 + $0x98] sm:$0xf]
    %v58 = vld [vmem:[%s0 + $0x9c] sm:$0xf]
    %v59 = vld [vmem:[%s0 + $0xa0] sm:$0xf]
    %v60 = vld [vmem:[%s0 + $0xa4] sm:$0xf]
    %v61 = vld [vmem:[%s0 + $0xa8] sm:$0xf]
    %v62 = vld [vmem:[%s0 + $0xac] sm:$0xf]
    %v63 = vld [vmem:[%s0 + $0xb0] sm:$0xf]
    %v64 = vld [vmem:[%s0 + $0xb4] sm:$0xf]
    %v65 = vld [vmem:[%s0 + $0xb8] sm:$0xf]
    %v66 = vld [vmem:[%s0 + $0xbc] sm:$0xf]
    %v67 = vld [vmem:[%s0 + $0xc0] sm:$0xf]
    %v68 = vld [vmem:[%s0 + $0xc4] sm:$0xf]
    %v69 = vld [vmem:[%s0 + $0xc8] sm:$0xf]
    %v70 = vld [vmem:[%s0 + $0xcc] sm:$0xf]
    %v71 = vld [vmem:[%s0 + $0xd0] sm:$0xf]
    %v72 = vld [vmem:[%s0 + $0xd4] sm:$0xf]
    %v73 = vld [vmem:[%s0 + $0xd8] sm:$0xf]
    %v74 = vld [vmem:[%s0 + $0xdc] sm:$0xf]
    %v75 = vld [vmem:[%s0 + $0xe0] sm:$0xf]
    %v76 = vld [vmem:[%s0 + $0xe4] sm:$0xf]
    %v77 = vld [vmem:[%s0 + $0xe8] sm:$0xf]
    %v78 = vld [vmem:[%s0 + $0xec] sm:$0xf]
    %v79 = vld [vmem:[%s0 + $0xf0] sm:$0xf]
    %v80 = vld [vmem:[%s0 + $0xf4] sm:$0xf]
    %v81 = vld [vmem:[%s0 + $0xf8] sm:$0xf]
    %v82 = vld [vmem:[%s0 + $0xfc] sm:$0xf]
    %v83 = vld [vmem:[%s1] sm:$0xf]
    %v84 = vld [vmem:[%s1 + $0x4] sm:$0xf]
    %v85 = vld [vmem:[%s1 + $0x8] sm:$0xf]
    %v86 = vld [vmem:[%s1 + $0xc] sm:$0xf]
    %v151 = vunpack.c.l.b16 %v19
    %v152 = vunpack.c.l.b16 %v20
    %v153 = vunpack.c.l.b16 %v21
    %v154 = vunpack.c.l.b16 %v22
    %v155 = vunpack.c.l.b16 %v23
    %v156 = vunpack.c.l.b16 %v24
    %v157 = vunpack.c.l.b16 %v25
    %v158 = vunpack.c.l.b16 %v26
    %v159 = vunpack.c.l.b16 %v27
    %v160 = vunpack.c.l.b16 %v28
    %v161 = vunpack.c.l.b16 %v29
    %v162 = vunpack.c.l.b16 %v30
    %v163 = vunpack.c.l.b16 %v31
    %v164 = vunpack.c.l.b16 %v32
    %v165 = vunpack.c.l.b16 %v33
    %v166 = vunpack.c.l.b16 %v34
    %v167 = vunpack.c.l.b16 %v35
    %v168 = vunpack.c.l.b16 %v36
    %v169 = vunpack.c.l.b16 %v37
    %v170 = vunpack.c.l.b16 %v38
    %v171 = vunpack.c.l.b16 %v39
    %v172 = vunpack.c.l.b16 %v40
    %v173 = vunpack.c.l.b16 %v41
    %v174 = vunpack.c.l.b16 %v42
    %v175 = vunpack.c.l.b16 %v43
    %v176 = vunpack.c.l.b16 %v44
    %v177 = vunpack.c.l.b16 %v45
    %v178 = vunpack.c.l.b16 %v46
    %v179 = vunpack.c.l.b16 %v47
    %v180 = vunpack.c.l.b16 %v48
    %v181 = vunpack.c.l.b16 %v49
    %v182 = vunpack.c.l.b16 %v50
    %v183 = vunpack.c.l.b16 %v51
    %v184 = vunpack.c.l.b16 %v52
    %v185 = vunpack.c.l.b16 %v53
    %v186 = vunpack.c.l.b16 %v54
    %v187 = vunpack.c.l.b16 %v55
    %v188 = vunpack.c.l.b16 %v56
    %v189 = vunpack.c.l.b16 %v57
    %v190 = vunpack.c.l.b16 %v58
    %v191 = vunpack.c.l.b16 %v59
    %v192 = vunpack.c.l.b16 %v60
    %v193 = vunpack.c.l.b16 %v61
    %v194 = vunpack.c.l.b16 %v62
    %v195 = vunpack.c.l.b16 %v63
    %v196 = vunpack.c.l.b16 %v64
    %v197 = vunpack.c.l.b16 %v65
    %v198 = vunpack.c.l.b16 %v66
    %v199 = vunpack.c.l.b16 %v67
    %v200 = vunpack.c.l.b16 %v68
    %v201 = vunpack.c.l.b16 %v69
    %v202 = vunpack.c.l.b16 %v70
    %v203 = vunpack.c.l.b16 %v71
    %v204 = vunpack.c.l.b16 %v72
    %v205 = vunpack.c.l.b16 %v73
    %v206 = vunpack.c.l.b16 %v74
    %v207 = vunpack.c.l.b16 %v75
    %v208 = vunpack.c.l.b16 %v76
    %v209 = vunpack.c.l.b16 %v77
    %v210 = vunpack.c.l.b16 %v78
    %v211 = vunpack.c.l.b16 %v79
    %v212 = vunpack.c.l.b16 %v80
    %v213 = vunpack.c.l.b16 %v81
    %v214 = vunpack.c.l.b16 %v82
    %v215 = vpack.c.b16 %v152, %v151
    %v216 = vpack.c.b16 %v154, %v153
    %v217 = vpack.c.b16 %v156, %v155
    %v218 = vpack.c.b16 %v158, %v157
    %v219 = vpack.c.b16 %v160, %v159
    %v220 = vpack.c.b16 %v162, %v161
    %v221 = vpack.c.b16 %v164, %v163
    %v222 = vpack.c.b16 %v166, %v165
    %v223 = vpack.c.b16 %v168, %v167
    %v224 = vpack.c.b16 %v170, %v169
    %v225 = vpack.c.b16 %v172, %v171
    %v226 = vpack.c.b16 %v174, %v173
    %v227 = vpack.c.b16 %v176, %v175
    %v228 = vpack.c.b16 %v178, %v177
    %v229 = vpack.c.b16 %v180, %v179
    %v230 = vpack.c.b16 %v182, %v181
    %v231 = vpack.c.b16 %v184, %v183
    %v232 = vpack.c.b16 %v186, %v185
    %v233 = vpack.c.b16 %v188, %v187
    %v234 = vpack.c.b16 %v190, %v189
    %v235 = vpack.c.b16 %v192, %v191
    %v236 = vpack.c.b16 %v194, %v193
    %v237 = vpack.c.b16 %v196, %v195
    %v238 = vpack.c.b16 %v198, %v197
    %v239 = vpack.c.b16 %v200, %v199
    %v240 = vpack.c.b16 %v202, %v201
    %v241 = vpack.c.b16 %v204, %v203
    %v242 = vpack.c.b16 %v206, %v205
    %v243 = vpack.c.b16 %v208, %v207
    %v244 = vpack.c.b16 %v210, %v209
    %v245 = vpack.c.b16 %v212, %v211
    %v246 = vpack.c.b16 %v214, %v213
    %v251 = vunpack.c.l.b16 %v83
    %v252 = vunpack.c.l.b16 %v84
    %v253 = vunpack.c.l.b16 %v85
    %v254 = vunpack.c.l.b16 %v86
    %v255 = vpack.c.b16 %v252, %v251
    %v256 = vpack.c.b16 %v254, %v253
    %vm259 = vcmask 261120
    %v261 = vsel %vm259, %v215, 0
    %v264 = vsel %vm259, %v216, 0
    %v267 = vsel %vm259, %v217, 0
    %v270 = vsel %vm259, %v218, 0
    %v273 = vsel %vm259, %v219, 0
    %v276 = vsel %vm259, %v220, 0
    %v279 = vsel %vm259, %v221, 0
    %v282 = vsel %vm259, %v222, 0
    %v285 = vsel %vm259, %v223, 0
    %v288 = vsel %vm259, %v224, 0
    %v291 = vsel %vm259, %v225, 0
    %v294 = vsel %vm259, %v226, 0
    %v297 = vsel %vm259, %v227, 0
    %v300 = vsel %vm259, %v228, 0
    %v303 = vsel %vm259, %v229, 0
    %v306 = vsel %vm259, %v230, 0
    %v309 = vsel %vm259, %v231, 0
    %v312 = vsel %vm259, %v232, 0
    %v315 = vsel %vm259, %v233, 0
    %v318 = vsel %vm259, %v234, 0
    %v321 = vsel %vm259, %v235, 0
    %v324 = vsel %vm259, %v236, 0
    %v327 = vsel %vm259, %v237, 0
    %v330 = vsel %vm259, %v238, 0
    %v333 = vsel %vm259, %v239, 0
    %v336 = vsel %vm259, %v240, 0
    %v339 = vsel %vm259, %v241, 0
    %v342 = vsel %vm259, %v242, 0
    %v345 = vsel %vm259, %v243, 0
    %v348 = vsel %vm259, %v244, 0
    %v351 = vsel %vm259, %v245, 0
    %v354 = vsel %vm259, %v246, 0
    %356 = vmatprep.subr.bf16.mxu0 0
    %357 = vmatpush1.bf16.msra.mxu0 %v255
    %358 = vmatprep.subr.bf16.mxu0 0
    %359 = vmatpush1.bf16.msra.mxu0 %v256
    %360 = vmatprep.subr.bf16.mxu0 0
    %361 = vmatpush1.bf16.msra.mxu0 0
    %362 = vmatprep.subr.bf16.mxu0 0
    %363 = vmatpush1.bf16.msra.mxu0 0
    %364 = vmatprep.subr.bf16.mxu0 0
    %365 = vmatpush1.bf16.msra.mxu0 0
    %366 = vmatprep.subr.bf16.mxu0 0
    %367 = vmatpush1.bf16.msra.mxu0 0
    %368 = vmatprep.subr.bf16.mxu0 0
    %369 = vmatpush1.bf16.msra.mxu0 0
    %370 = vmatprep.subr.bf16.mxu0 0
    %371 = vmatpush1.bf16.msra.mxu0 0
    %372 = vmatprep.subr.bf16.mxu0 0
    %373 = vmatpush1.bf16.msra.mxu0 0
    %374 = vmatprep.subr.bf16.mxu0 0
    %375 = vmatpush1.bf16.msra.mxu0 0
    %376 = vmatprep.subr.bf16.mxu0 0
    %377 = vmatpush1.bf16.msra.mxu0 0
    %378 = vmatprep.subr.bf16.mxu0 0
    %379 = vmatpush1.bf16.msra.mxu0 0
    %380 = vmatprep.subr.bf16.mxu0 0
    %381 = vmatpush1.bf16.msra.mxu0 0
    %382 = vmatprep.subr.bf16.mxu0 0
    %383 = vmatpush1.bf16.msra.mxu0 0
    %384 = vmatprep.subr.bf16.mxu0 0
    %385 = vmatpush1.bf16.msra.mxu0 0
    %386 = vmatprep.subr.bf16.mxu0 0
    %387 = vmatpush1.bf16.msra.mxu0 0
    %388 = vmatprep.mubr.bf16.mxu0 0
    %389 = vmatmul.mubr.bf16.gmra.mrb[0].mxu0 %v261
    %v390 = vpop.f32.mrb[0].mxu0
    %v391 = vadd.f32 0.0, %v390
    %v392 = vpop.f32.mrb[0].mxu0
    %v393 = vpop.f32.mrb[0].mxu0
    %v394 = vadd.f32 0.0, %v393
    %v395 = vpop.f32.mrb[0].mxu0
    %396 = vmatprep.mubr.bf16.mxu0 0
    %397 = vmatmul.mubr.bf16.gmra.mrb[0].mxu0 %v264
    %v398 = vpop.f32.mrb[0].mxu0
    %v399 = vadd.f32 0.0, %v398
    %v400 = vpop.f32.mrb[0].mxu0
    %v401 = vpop.f32.mrb[0].mxu0
    %v402 = vadd.f32 0.0, %v401
    %v403 = vpop.f32.mrb[0].mxu0
    %404 = vmatprep.mubr.bf16.mxu0 0
    %405 = vmatmul.mubr.bf16.gmra.mrb[0].mxu0 %v267
    %v406 = vpop.f32.mrb[0].mxu0
    %v407 = vadd.f32 0.0, %v406
    %v408 = vpop.f32.mrb[0].mxu0
    %v409 = vpop.f32.mrb[0].mxu0
    %v410 = vadd.f32 0.0, %v409
    %v411 = vpop.f32.mrb[0].mxu0
    %412 = vmatprep.mubr.bf16.mxu0 0
    %413 = vmatmul.mubr.bf16.gmra.mrb[0].mxu0 %v270
    %v414 = vpop.f32.mrb[0].mxu0
    %v415 = vadd.f32 0.0, %v414
    %v416 = vpop.f32.mrb[0].mxu0
    %v417 = vpop.f32.mrb[0].mxu0
    %v418 = vadd.f32 0.0, %v417
    %v419 = vpop.f32.mrb[0].mxu0
    %420 = vmatprep.mubr.bf16.mxu0 0
    %421 = vmatmul.mubr.bf16.gmra.mrb[0].mxu0 %v273
    %v422 = vpop.f32.mrb[0].mxu0
    %v423 = vadd.f32 0.0, %v422
    %v424 = vpop.f32.mrb[0].mxu0
    %v425 = vpop.f32.mrb[0].mxu0
    %v426 = vadd.f32 0.0, %v425
    %v427 = vpop.f32.mrb[0].mxu0
    %428 = vmatprep.mubr.bf16.mxu0 0
    %429 = vmatmul.mubr.bf16.gmra.mrb[0].mxu0 %v276
    %v430 = vpop.f32.mrb[0].mxu0
    %v431 = vadd.f32 0.0, %v430
    %v432 = vpop.f32.mrb[0].mxu0
    %v433 = vpop.f32.mrb[0].mxu0
    %v434 = vadd.f32 0.0, %v433
    %v435 = vpop.f32.mrb[0].mxu0
    %436 = vmatprep.mubr.bf16.mxu0 0
    %437 = vmatmul.mubr.bf16.gmra.mrb[0].mxu0 %v279
    %v438 = vpop.f32.mrb[0].mxu0
    %v439 = vadd.f32 0.0, %v438
    %v440 = vpop.f32.mrb[0].mxu0
    %v441 = vpop.f32.mrb[0].mxu0
    %v442 = vadd.f32 0.0, %v441
    %v443 = vpop.f32.mrb[0].mxu0
    %444 = vmatprep.mubr.bf16.mxu0 0
    %445 = vmatmul.mubr.bf16.gmra.mrb[0].mxu0 %v282
    %v446 = vpop.f32.mrb[0].mxu0
    %v447 = vadd.f32 0.0, %v446
    %v448 = vpop.f32.mrb[0].mxu0
    %v449 = vpop.f32.mrb[0].mxu0
    %v450 = vadd.f32 0.0, %v449
    %v451 = vpop.f32.mrb[0].mxu0
    %452 = vmatprep.mubr.bf16.mxu0 0
    %453 = vmatmul.mubr.bf16.gmra.mrb[0].mxu0 %v285
    %v454 = vpop.f32.mrb[0].mxu0
    %v455 = vadd.f32 0.0, %v454
    %v456 = vpop.f32.mrb[0].mxu0
    %v457 = vpop.f32.mrb[0].mxu0
    %v458 = vadd.f32 0.0, %v457
    %v459 = vpop.f32.mrb[0].mxu0
    %460 = vmatprep.mubr.bf16.mxu0 0
    %461 = vmatmul.mubr.bf16.gmra.mrb[0].mxu0 %v288
    %v462 = vpop.f32.mrb[0].mxu0
    %v463 = vadd.f32 0.0, %v462
    %v464 = vpop.f32.mrb[0].mxu0
    %v465 = vpop.f32.mrb[0].mxu0
    %v466 = vadd.f32 0.0, %v465
    %v467 = vpop.f32.mrb[0].mxu0
    %468 = vmatprep.mubr.bf16.mxu0 0
    %469 = vmatmul.mubr.bf16.gmra.mrb[0].mxu0 %v291
    %v470 = vpop.f32.mrb[0].mxu0
    %v471 = vadd.f32 0.0, %v470
    %v472 = vpop.f32.mrb[0].mxu0
    %v473 = vpop.f32.mrb[0].mxu0
    %v474 = vadd.f32 0.0, %v473
    %v475 = vpop.f32.mrb[0].mxu0
    %476 = vmatprep.mubr.bf16.mxu0 0
    %477 = vmatmul.mubr.bf16.gmra.mrb[0].mxu0 %v294
    %v478 = vpop.f32.mrb[0].mxu0
    %v479 = vadd.f32 0.0, %v478
    %v480 = vpop.f32.mrb[0].mxu0
    %v481 = vpop.f32.mrb[0].mxu0
    %v482 = vadd.f32 0.0, %v481
    %v483 = vpop.f32.mrb[0].mxu0
    %484 = vmatprep.mubr.bf16.mxu0 0
    %485 = vmatmul.mubr.bf16.gmra.mrb[0].mxu0 %v297
    %v486 = vpop.f32.mrb[0].mxu0
    %v487 = vadd.f32 0.0, %v486
    %v488 = vpop.f32.mrb[0].mxu0
    %v489 = vpop.f32.mrb[0].mxu0
    %v490 = vadd.f32 0.0, %v489
    %v491 = vpop.f32.mrb[0].mxu0
    %492 = vmatprep.mubr.bf16.mxu0 0
    %493 = vmatmul.mubr.bf16.gmra.mrb[0].mxu0 %v300
    %v494 = vpop.f32.mrb[0].mxu0
    %v495 = vadd.f32 0.0, %v494
    %v496 = vpop.f32.mrb[0].mxu0
    %v497 = vpop.f32.mrb[0].mxu0
    %v498 = vadd.f32 0.0, %v497
    %v499 = vpop.f32.mrb[0].mxu0
    %500 = vmatprep.mubr.bf16.mxu0 0
    %501 = vmatmul.mubr.bf16.gmra.mrb[0].mxu0 %v303
    %v502 = vpop.f32.mrb[0].mxu0
    %v503 = vadd.f32 0.0, %v502
    %v504 = vpop.f32.mrb[0].mxu0
    %v505 = vpop.f32.mrb[0].mxu0
    %v506 = vadd.f32 0.0, %v505
    %v507 = vpop.f32.mrb[0].mxu0
    %508 = vmatprep.mubr.bf16.mxu0 0
    %509 = vmatmul.mubr.bf16.gmra.mrb[0].mxu0 %v306
    %v510 = vpop.f32.mrb[0].mxu0
    %v511 = vadd.f32 0.0, %v510
    %v512 = vpop.f32.mrb[0].mxu0
    %v513 = vpop.f32.mrb[0].mxu0
    %v514 = vadd.f32 0.0, %v513
    %v515 = vpop.f32.mrb[0].mxu0
    %516 = vmatprep.mubr.bf16.mxu0 0
    %517 = vmatmul.mubr.bf16.gmra.mrb[0].mxu0 %v309
    %v518 = vpop.f32.mrb[0].mxu0
    %v519 = vadd.f32 0.0, %v518
    %v520 = vpop.f32.mrb[0].mxu0
    %v521 = vpop.f32.mrb[0].mxu0
    %v522 = vadd.f32 0.0, %v521
    %v523 = vpop.f32.mrb[0].mxu0
    %524 = vmatprep.mubr.bf16.mxu0 0
    %525 = vmatmul.mubr.bf16.gmra.mrb[0].mxu0 %v312
    %v526 = vpop.f32.mrb[0].mxu0
    %v527 = vadd.f32 0.0, %v526
    %v528 = vpop.f32.mrb[0].mxu0
    %v529 = vpop.f32.mrb[0].mxu0
    %v530 = vadd.f32 0.0, %v529
    %v531 = vpop.f32.mrb[0].mxu0
    %532 = vmatprep.mubr.bf16.mxu0 0
    %533 = vmatmul.mubr.bf16.gmra.mrb[0].mxu0 %v315
    %v534 = vpop.f32.mrb[0].mxu0
    %v535 = vadd.f32 0.0, %v534
    %v536 = vpop.f32.mrb[0].mxu0
    %v537 = vpop.f32.mrb[0].mxu0
    %v538 = vadd.f32 0.0, %v537
    %v539 = vpop.f32.mrb[0].mxu0
    %540 = vmatprep.mubr.bf16.mxu0 0
    %541 = vmatmul.mubr.bf16.gmra.mrb[0].mxu0 %v318
    %v542 = vpop.f32.mrb[0].mxu0
    %v543 = vadd.f32 0.0, %v542
    %v544 = vpop.f32.mrb[0].mxu0
    %v545 = vpop.f32.mrb[0].mxu0
    %v546 = vadd.f32 0.0, %v545
    %v547 = vpop.f32.mrb[0].mxu0
    %548 = vmatprep.mubr.bf16.mxu0 0
    %549 = vmatmul.mubr.bf16.gmra.mrb[0].mxu0 %v321
    %v550 = vpop.f32.mrb[0].mxu0
    %v551 = vadd.f32 0.0, %v550
    %v552 = vpop.f32.mrb[0].mxu0
    %v553 = vpop.f32.mrb[0].mxu0
    %v554 = vadd.f32 0.0, %v553
    %v555 = vpop.f32.mrb[0].mxu0
    %556 = vmatprep.mubr.bf16.mxu0 0
    %557 = vmatmul.mubr.bf16.gmra.mrb[0].mxu0 %v324
    %v558 = vpop.f32.mrb[0].mxu0
    %v559 = vadd.f32 0.0, %v558
    %v560 = vpop.f32.mrb[0].mxu0
    %v561 = vpop.f32.mrb[0].mxu0
    %v562 = vadd.f32 0.0, %v561
    %v563 = vpop.f32.mrb[0].mxu0
    %564 = vmatprep.mubr.bf16.mxu0 0
    %565 = vmatmul.mubr.bf16.gmra.mrb[0].mxu0 %v327
    %v566 = vpop.f32.mrb[0].mxu0
    %v567 = vadd.f32 0.0, %v566
    %v568 = vpop.f32.mrb[0].mxu0
    %v569 = vpop.f32.mrb[0].mxu0
    %v570 = vadd.f32 0.0, %v569
    %v571 = vpop.f32.mrb[0].mxu0
    %572 = vmatprep.mubr.bf16.mxu0 0
    %573 = vmatmul.mubr.bf16.gmra.mrb[0].mxu0 %v330
    %v574 = vpop.f32.mrb[0].mxu0
    %v575 = vadd.f32 0.0, %v574
    %v576 = vpop.f32.mrb[0].mxu0
    %v577 = vpop.f32.mrb[0].mxu0
    %v578 = vadd.f32 0.0, %v577
    %v579 = vpop.f32.mrb[0].mxu0
    %580 = vmatprep.mubr.bf16.mxu0 0
    %581 = vmatmul.mubr.bf16.gmra.mrb[0].mxu0 %v333
    %v582 = vpop.f32.mrb[0].mxu0
    %v583 = vadd.f32 0.0, %v582
    %v584 = vpop.f32.mrb[0].mxu0
    %v585 = vpop.f32.mrb[0].mxu0
    %v586 = vadd.f32 0.0, %v585
    %v587 = vpop.f32.mrb[0].mxu0
    %588 = vmatprep.mubr.bf16.mxu0 0
    %589 = vmatmul.mubr.bf16.gmra.mrb[0].mxu0 %v336
    %v590 = vpop.f32.mrb[0].mxu0
    %v591 = vadd.f32 0.0, %v590
    %v592 = vpop.f32.mrb[0].mxu0
    %v593 = vpop.f32.mrb[0].mxu0
    %v594 = vadd.f32 0.0, %v593
    %v595 = vpop.f32.mrb[0].mxu0
    %596 = vmatprep.mubr.bf16.mxu0 0
    %597 = vmatmul.mubr.bf16.gmra.mrb[0].mxu0 %v339
    %v598 = vpop.f32.mrb[0].mxu0
    %v599 = vadd.f32 0.0, %v598
    %v600 = vpop.f32.mrb[0].mxu0
    %v601 = vpop.f32.mrb[0].mxu0
    %v602 = vadd.f32 0.0, %v601
    %v603 = vpop.f32.mrb[0].mxu0
    %604 = vmatprep.mubr.bf16.mxu0 0
    %605 = vmatmul.mubr.bf16.gmra.mrb[0].mxu0 %v342
    %v606 = vpop.f32.mrb[0].mxu0
    %v607 = vadd.f32 0.0, %v606
    %v608 = vpop.f32.mrb[0].mxu0
    %v609 = vpop.f32.mrb[0].mxu0
    %v610 = vadd.f32 0.0, %v609
    %v611 = vpop.f32.mrb[0].mxu0
    %612 = vmatprep.mubr.bf16.mxu0 0
    %613 = vmatmul.mubr.bf16.gmra.mrb[0].mxu0 %v345
    %v614 = vpop.f32.mrb[0].mxu0
    %v615 = vadd.f32 0.0, %v614
    %v616 = vpop.f32.mrb[0].mxu0
    %v617 = vpop.f32.mrb[0].mxu0
    %v618 = vadd.f32 0.0, %v617
    %v619 = vpop.f32.mrb[0].mxu0
    %620 = vmatprep.mubr.bf16.mxu0 0
    %621 = vmatmul.mubr.bf16.gmra.mrb[0].mxu0 %v348
    %v622 = vpop.f32.mrb[0].mxu0
    %v623 = vadd.f32 0.0, %v622
    %v624 = vpop.f32.mrb[0].mxu0
    %v625 = vpop.f32.mrb[0].mxu0
    %v626 = vadd.f32 0.0, %v625
    %v627 = vpop.f32.mrb[0].mxu0
    %628 = vmatprep.mubr.bf16.mxu0 0
    %629 = vmatmul.mubr.bf16.gmra.mrb[0].mxu0 %v351
    %v630 = vpop.f32.mrb[0].mxu0
    %v631 = vadd.f32 0.0, %v630
    %v632 = vpop.f32.mrb[0].mxu0
    %v633 = vpop.f32.mrb[0].mxu0
    %v634 = vadd.f32 0.0, %v633
    %v635 = vpop.f32.mrb[0].mxu0
    %636 = vmatprep.mubr.bf16.mxu0 0
    %637 = vmatmul.mubr.bf16.gmra.mrb[0].mxu0 %v354
    %v638 = vpop.f32.mrb[0].mxu0
    %v639 = vadd.f32 0.0, %v638
    %v640 = vpop.f32.mrb[0].mxu0
    %v641 = vpop.f32.mrb[0].mxu0
    %v642 = vadd.f32 0.0, %v641
    %v643 = vpop.f32.mrb[0].mxu0
    %644 = vdwg.mxu0
    %v645 = vmax.f32 %v391, 0.0
    %v646 = vmax.f32 %v394, 0.0
    %v647 = vmax.f32 %v399, 0.0
    %v648 = vmax.f32 %v402, 0.0
    %v649 = vmax.f32 %v407, 0.0
    %v650 = vmax.f32 %v410, 0.0
    %v651 = vmax.f32 %v415, 0.0
    %v652 = vmax.f32 %v418, 0.0
    %v653 = vmax.f32 %v423, 0.0
    %v654 = vmax.f32 %v426, 0.0
    %v655 = vmax.f32 %v431, 0.0
    %v656 = vmax.f32 %v434, 0.0
    %v657 = vmax.f32 %v439, 0.0
    %v658 = vmax.f32 %v442, 0.0
    %v659 = vmax.f32 %v447, 0.0
    %v660 = vmax.f32 %v450, 0.0
    %v661 = vmax.f32 %v455, 0.0
    %v662 = vmax.f32 %v458, 0.0
    %v663 = vmax.f32 %v463, 0.0
    %v664 = vmax.f32 %v466, 0.0
    %v665 = vmax.f32 %v471, 0.0
    %v666 = vmax.f32 %v474, 0.0
    %v667 = vmax.f32 %v479, 0.0
    %v668 = vmax.f32 %v482, 0.0
    %v669 = vmax.f32 %v487, 0.0
    %v670 = vmax.f32 %v490, 0.0
    %v671 = vmax.f32 %v495, 0.0
    %v672 = vmax.f32 %v498, 0.0
    %v673 = vmax.f32 %v503, 0.0
    %v674 = vmax.f32 %v506, 0.0
    %v675 = vmax.f32 %v511, 0.0
    %v676 = vmax.f32 %v514, 0.0
    %v677 = vmax.f32 %v519, 0.0
    %v678 = vmax.f32 %v522, 0.0
    %v679 = vmax.f32 %v527, 0.0
    %v680 = vmax.f32 %v530, 0.0
    %v681 = vmax.f32 %v535, 0.0
    %v682 = vmax.f32 %v538, 0.0
    %v683 = vmax.f32 %v543, 0.0
    %v684 = vmax.f32 %v546, 0.0
    %v685 = vmax.f32 %v551, 0.0
    %v686 = vmax.f32 %v554, 0.0
    %v687 = vmax.f32 %v559, 0.0
    %v688 = vmax.f32 %v562, 0.0
    %v689 = vmax.f32 %v567, 0.0
    %v690 = vmax.f32 %v570, 0.0
    %v691 = vmax.f32 %v575, 0.0
    %v692 = vmax.f32 %v578, 0.0
    %v693 = vmax.f32 %v583, 0.0
    %v694 = vmax.f32 %v586, 0.0
    %v695 = vmax.f32 %v591, 0.0
    %v696 = vmax.f32 %v594, 0.0
    %v697 = vmax.f32 %v599, 0.0
    %v698 = vmax.f32 %v602, 0.0
    %v699 = vmax.f32 %v607, 0.0
    %v700 = vmax.f32 %v610, 0.0
    %v701 = vmax.f32 %v615, 0.0
    %v702 = vmax.f32 %v618, 0.0
    %v703 = vmax.f32 %v623, 0.0
    %v704 = vmax.f32 %v626, 0.0
    %v705 = vmax.f32 %v631, 0.0
    %v706 = vmax.f32 %v634, 0.0
    %v707 = vmax.f32 %v639, 0.0
    %v708 = vmax.f32 %v642, 0.0
    %v709 = vadd.f32 %v645, %v646
    %v710 = vadd.f32 %v709, %v647
    %v711 = vadd.f32 %v710, %v648
    %v712 = vadd.f32 %v711, %v649
    %v713 = vadd.f32 %v712, %v650
    %v714 = vadd.f32 %v713, %v651
    %v715 = vadd.f32 %v714, %v652
    %v716 = vadd.f32 %v715, %v653
    %v717 = vadd.f32 %v716, %v654
    %v718 = vadd.f32 %v717, %v655
    %v719 = vadd.f32 %v718, %v656
    %v720 = vadd.f32 %v719, %v657
    %v721 = vadd.f32 %v720, %v658
    %v722 = vadd.f32 %v721, %v659
    %v723 = vadd.f32 %v722, %v660
    %v724 = vadd.f32 %v723, %v661
    %v725 = vadd.f32 %v724, %v662
    %v726 = vadd.f32 %v725, %v663
    %v727 = vadd.f32 %v726, %v664
    %v728 = vadd.f32 %v727, %v665
    %v729 = vadd.f32 %v728, %v666
    %v730 = vadd.f32 %v729, %v667
    %v731 = vadd.f32 %v730, %v668
    %v732 = vadd.f32 %v731, %v669
    %v733 = vadd.f32 %v732, %v670
    %v734 = vadd.f32 %v733, %v671
    %v735 = vadd.f32 %v734, %v672
    %v736 = vadd.f32 %v735, %v673
    %v737 = vadd.f32 %v736, %v674
    %v738 = vadd.f32 %v737, %v675
    %v739 = vadd.f32 %v738, %v676
    %v740 = vrot.slane %v739, 4
    %v741 = vadd.f32 %v739, %v740
    %v742 = vrot.slane %v741, 2
    %v743 = vadd.f32 %v741, %v742
    %v744 = vrot.slane %v743, 1
    %v745 = vadd.f32 %v743, %v744
    %v746 = vadd.f32 %v677, %v678
    %v747 = vadd.f32 %v746, %v679
    %v748 = vadd.f32 %v747, %v680
    %v749 = vadd.f32 %v748, %v681
    %v750 = vadd.f32 %v749, %v682
    %v751 = vadd.f32 %v750, %v683
    %v752 = vadd.f32 %v751, %v684
    %v753 = vadd.f32 %v752, %v685
    %v754 = vadd.f32 %v753, %v686
    %v755 = vadd.f32 %v754, %v687
    %v756 = vadd.f32 %v755, %v688
    %v757 = vadd.f32 %v756, %v689
    %v758 = vadd.f32 %v757, %v690
    %v759 = vadd.f32 %v758, %v691
    %v760 = vadd.f32 %v759, %v692
    %v761 = vadd.f32 %v760, %v693
    %v762 = vadd.f32 %v761, %v694
    %v763 = vadd.f32 %v762, %v695
    %v764 = vadd.f32 %v763, %v696
    %v765 = vadd.f32 %v764, %v697
    %v766 = vadd.f32 %v765, %v698
    %v767 = vadd.f32 %v766, %v699
    %v768 = vadd.f32 %v767, %v700
    %v769 = vadd.f32 %v768, %v701
    %v770 = vadd.f32 %v769, %v702
    %v771 = vadd.f32 %v770, %v703
    %v772 = vadd.f32 %v771, %v704
    %v773 = vadd.f32 %v772, %v705
    %v774 = vadd.f32 %v773, %v706
    %v775 = vadd.f32 %v774, %v707
    %v776 = vadd.f32 %v775, %v708
    %v777 = vrot.slane %v776, 4
    %v778 = vadd.f32 %v776, %v777
    %v779 = vrot.slane %v778, 2
    %v780 = vadd.f32 %v778, %v779
    %v781 = vrot.slane %v780, 1
    %v782 = vadd.f32 %v780, %v781
    %v783 = vpack.c.bf16 %v745, %v745
    %v784 = vpack.c.bf16 %v782, %v782
    %v785 = vld [vmem:[%s2] sm:$0xf]
    %v786 = vld [vmem:[%s2 + $0x4] sm:$0xf]
    %v787 = vld [vmem:[%s2 + $0x8] sm:$0xf]
    %v788 = vld [vmem:[%s2 + $0xc] sm:$0xf]
    %v789 = vld [vmem:[%s2 + $0x10] sm:$0xf]
    %v790 = vld [vmem:[%s2 + $0x14] sm:$0xf]
    %v791 = vld [vmem:[%s2 + $0x18] sm:$0xf]
    %v792 = vld [vmem:[%s2 + $0x1c] sm:$0xf]
    %v793 = vld [vmem:[%s2 + $0x20] sm:$0xf]
    %v794 = vld [vmem:[%s2 + $0x24] sm:$0xf]
    %v795 = vld [vmem:[%s2 + $0x28] sm:$0xf]
    %v796 = vld [vmem:[%s2 + $0x2c] sm:$0xf]
    %v797 = vld [vmem:[%s2 + $0x30] sm:$0xf]
    %v798 = vld [vmem:[%s2 + $0x34] sm:$0xf]
    %v799 = vld [vmem:[%s2 + $0x38] sm:$0xf]
    %v800 = vld [vmem:[%s2 + $0x3c] sm:$0xf]
    %v801 = vld [vmem:[%s3] sm:$0x1]
    %v803 = vlaneseq
    %v804 = vshrl.u32 %v803, 7
    %v805 = vsub.s32 0, %v804
    %v806 = vrot.slane %v801, %v805
    %v810 = vunpack.c.l.b16 %v783
    %v811 = vunpack.c.l.b16 %v784
    %vm812 = vcmask 1041409
    %v813 = vsel %vm812, %v811, %v810
    %v814 = vpack.c.b16 %v813, %v813
    %v832 = vunpack.c.l.b16 %v785
    %v833 = vunpack.c.l.b16 %v786
    %v834 = vunpack.c.l.b16 %v787
    %v835 = vunpack.c.l.b16 %v788
    %v836 = vunpack.c.l.b16 %v789
    %v837 = vunpack.c.l.b16 %v790
    %v838 = vunpack.c.l.b16 %v791
    %v839 = vunpack.c.l.b16 %v792
    %v840 = vunpack.c.l.b16 %v793
    %v841 = vunpack.c.l.b16 %v794
    %v842 = vunpack.c.l.b16 %v795
    %v843 = vunpack.c.l.b16 %v796
    %v844 = vunpack.c.l.b16 %v797
    %v845 = vunpack.c.l.b16 %v798
    %v846 = vunpack.c.l.b16 %v799
    %v847 = vunpack.c.l.b16 %v800
    %v848 = vpack.c.b16 %v833, %v832
    %v849 = vpack.c.b16 %v835, %v834
    %v850 = vpack.c.b16 %v837, %v836
    %v851 = vpack.c.b16 %v839, %v838
    %v852 = vpack.c.b16 %v841, %v840
    %v853 = vpack.c.b16 %v843, %v842
    %v854 = vpack.c.b16 %v845, %v844
    %v855 = vpack.c.b16 %v847, %v846
    %864 = vmatprep.subr.bf16.mxu0 0
    %865 = vmatpush1.bf16.msra.mxu0 %v848
    %866 = vmatprep.subr.bf16.mxu0 0
    %867 = vmatpush1.bf16.msra.mxu0 %v849
    %868 = vmatprep.subr.bf16.mxu0 0
    %869 = vmatpush1.bf16.msra.mxu0 %v850
    %870 = vmatprep.subr.bf16.mxu0 0
    %871 = vmatpush1.bf16.msra.mxu0 %v851
    %872 = vmatprep.subr.bf16.mxu0 0
    %873 = vmatpush1.bf16.msra.mxu0 %v852
    %874 = vmatprep.subr.bf16.mxu0 0
    %875 = vmatpush1.bf16.msra.mxu0 %v853
    %876 = vmatprep.subr.bf16.mxu0 0
    %877 = vmatpush1.bf16.msra.mxu0 %v854
    %878 = vmatprep.subr.bf16.mxu0 0
    %879 = vmatpush1.bf16.msra.mxu0 %v855
    %880 = vmatprep.subr.bf16.mxu0 0
    %881 = vmatpush1.bf16.msra.mxu0 0
    %882 = vmatprep.subr.bf16.mxu0 0
    %883 = vmatpush1.bf16.msra.mxu0 0
    %884 = vmatprep.subr.bf16.mxu0 0
    %885 = vmatpush1.bf16.msra.mxu0 0
    %886 = vmatprep.subr.bf16.mxu0 0
    %887 = vmatpush1.bf16.msra.mxu0 0
    %888 = vmatprep.subr.bf16.mxu0 0
    %889 = vmatpush1.bf16.msra.mxu0 0
    %890 = vmatprep.subr.bf16.mxu0 0
    %891 = vmatpush1.bf16.msra.mxu0 0
    %892 = vmatprep.subr.bf16.mxu0 0
    %893 = vmatpush1.bf16.msra.mxu0 0
    %894 = vmatprep.subr.bf16.mxu0 0
    %895 = vmatpush1.bf16.msra.mxu0 0
    %896 = vmatprep.mubr.bf16.mxu0 0
    %897 = vmatmul.mubr.bf16.gmra.mrb[0].mxu0 %v814
    %v898 = vpop.f32.mrb[0].mxu0
    %v899 = vadd.f32 %v806, %v898
    %v900 = vpop.f32.mrb[0].mxu0
    %v901 = vpop.f32.mrb[0].mxu0
    %v902 = vpop.f32.mrb[0].mxu0
    %903 = vdwg.mxu0
    %904 = vst [vmem:[#allocation2] sm:$0x3] %v899
    // Predicated region
    $region18: #{tpu_custom_call.1} parent=1 // pred_check
      _
    $region19: #{tpu_custom_call.1} parent=1 // pred_check_branch
      %906 = sbr.rel (0) target = $region21
    $region20: #{tpu_custom_call.1} parent=1 // pred_region
      %s908 = ssub.s32 32, 32
      %909 = vsyncadd [#allocation3], %s908
      %s911 = sshll.u32 [#allocation2], 4
      %s912 = int_to_ptr.vmem [resolvable:$true] %s911
      %914 = dma.vmem_to_hbm [thread:$0]  %s912, 32, %s4, [#allocation3]
    $region21: #{tpu_custom_call.1} parent=1 // pred_fallthru
      _
    // Predicated region
    $region22: #{tpu_custom_call.1} parent=1 // pred_check
      _
    $region23: #{tpu_custom_call.1} parent=1 // pred_check_branch
      %916 = sbr.rel (0) target = $region25
    $region24: #{tpu_custom_call.1} parent=1 // pred_region
      %917 = dma.done [#allocation3], 32
    $region25: #{tpu_custom_call.1} parent=1 // pred_fallthru
      _
    %918 = vsyncpa [#allocation3], 1

</llo_original>
